<compile_context>
chip_gen: v5e
topology: v5e:2x2
jax: 0.10.0
libtpu: 0.0.40
codegen_flags: <defaults>
</compile_context>

<pallas_src>
import jax
import jax.numpy as jnp
from jax import lax
from jax.experimental import pallas as pl
from jax.experimental.pallas import tpu as pltpu


def _round_up(x, m):
    return ((x + m - 1) // m) * m


def _mlp_transposed(x, wb_refs, n_hidden_layers):
    """x: (TB, D) f32 fused embeddings -> (1, TB) f32 scores.

    Activations are kept transposed as (features, batch) so the batch lives on
    the 128-lane axis.  The first hidden layer contracts directly against x's
    feature axis (an "NT" matmul), so no explicit transpose is materialized.
    """
    w0 = wb_refs[0][...].astype(jnp.float32)        # (f1, D)   (PyTorch layout)
    b0 = wb_refs[1][...].astype(jnp.float32)        # (f1, 1)
    xt = lax.dot_general(w0, x, (((1,), (1,)), ((), ())),
                         preferred_element_type=jnp.float32) + b0
    xt = jnp.maximum(xt, 0.0)
    idx = 2
    for _ in range(1, n_hidden_layers):
        w = wb_refs[idx][...].astype(jnp.float32)   # (out_f, in_f)
        b = wb_refs[idx + 1][...].astype(jnp.float32)  # (out_f, 1)
        idx += 2
        xt = jnp.dot(w, xt, preferred_element_type=jnp.float32) + b
        xt = jnp.maximum(xt, 0.0)
    # Output layer (out_features == 1): VPU broadcast-mul + sublane reduce,
    # producing a lane-dense (1, TB) row (no 1-wide MXU matmul, no transpose).
    wo = wb_refs[idx][...].astype(jnp.float32)      # (F_last, 1)
    bo = wb_refs[idx + 1][...].astype(jnp.float32)  # (1, 1)
    return jnp.sum(xt * wo, axis=0, keepdims=True) + bo


def make_resident_kernel(n_hidden_layers, block_rows):
    """Fast path: embedding tables live in VMEM; gather = dynamic VMEM loads."""
    n_wb = 2 * n_hidden_layers + 2

    def kernel(u_ids_ref, i_ids_ref,          # SMEM scalar-prefetch ids
               u_tab_ref, i_tab_ref,          # VMEM-resident tables
               *rest):
        wb_refs = rest[:n_wb]
        out_ref = rest[n_wb]
        u_buf = rest[n_wb + 1]                # VMEM (TB, D)
        i_buf = rest[n_wb + 2]                # VMEM (TB, D)

        base = pl.program_id(0) * block_rows

        # In-kernel gather: plain dynamic-row loads/stores (vld/vst slots),
        # no DMA descriptors.  Unrolled x8 so the scalar id loads co-issue
        # with the vector loads/stores.
        @pl.loop(0, block_rows // 8)
        def _(r8):
            for j in range(8):
                r = r8 * 8 + j
                uid = u_ids_ref[base + r]
                iid = i_ids_ref[base + r]
                u_buf[pl.ds(r, 1), :] = u_tab_ref[pl.ds(uid, 1), :]
                i_buf[pl.ds(r, 1), :] = i_tab_ref[pl.ds(iid, 1), :]

        x = u_buf[...].astype(jnp.float32) * i_buf[...].astype(jnp.float32)
        y = _mlp_transposed(x, wb_refs, n_hidden_layers)      # (1, TB)
        out_ref[...] = y.reshape(1, 1, block_rows).astype(out_ref.dtype)

    return kernel


def make_hbm_gather_kernel(n_hidden_layers, block_rows, num_tiles):
    """Large-table path: per-row HBM DMAs, aggregate waits, double-buffered."""
    n_wb = 2 * n_hidden_layers + 2

    def kernel(u_ids_ref, i_ids_ref,          # SMEM scalar-prefetch ids
               u_tab_ref, i_tab_ref,          # HBM tables (pl.ANY)
               *rest):
        wb_refs = rest[:n_wb]
        out_ref = rest[n_wb]
        u_buf = rest[n_wb + 1]                # VMEM (2, TB, D)
        i_buf = rest[n_wb + 2]                # VMEM (2, TB, D)
        sem = rest[n_wb + 3]                  # DMA sems (2, 2): [slot, table]

        t = pl.program_id(0)
        slot = t % 2

        def issue_gather(tile, s):
            base = tile * block_rows
            # Unrolled x8 so SMEM id loads co-issue with descriptor pushes.
            @pl.loop(0, block_rows // 8)
            def _(r8):
                for j in range(8):
                    r = r8 * 8 + j
                    uid = u_ids_ref[base + r]
                    iid = i_ids_ref[base + r]
                    pltpu.make_async_copy(
                        u_tab_ref.at[uid], u_buf.at[s, r], sem.at[s, 0]).start()
                    pltpu.make_async_copy(
                        i_tab_ref.at[iid], i_buf.at[s, r], sem.at[s, 1]).start()

        # Prime the pipeline: the very first grid step gathers its own tile.
        @pl.when(t == 0)
        def _():
            issue_gather(t, slot)

        # ONE aggregate wait per table per step.  Invariant: DMA semaphores
        # count bytes; each slot receives exactly block_rows row copies into
        # <buf>[slot], so a wait descriptor sized as the full (TB, D) slot
        # (built from the same destination buffer used at start) consumes the
        # same byte count as block_rows row-sized waits.
        pltpu.make_async_copy(u_buf.at[slot], u_buf.at[slot], sem.at[slot, 0]).wait()
        pltpu.make_async_copy(i_buf.at[slot], i_buf.at[slot], sem.at[slot, 1]).wait()

        # Cross-step double buffering: start the NEXT tile's gather now so its
        # DMA latency hides behind this tile's compute + output writeback.
        @pl.when(t + 1 < num_tiles)
        def _():
            issue_gather(t + 1, 1 - slot)

        x = u_buf[slot].astype(jnp.float32) * i_buf[slot].astype(jnp.float32)
        y = _mlp_transposed(x, wb_refs, n_hidden_layers)      # (1, TB)
        out_ref[...] = y.reshape(1, 1, block_rows).astype(out_ref.dtype)

    return kernel


def ncf_forward(u_ids, i_ids, params, *,
                block_rows=1024,
                table_vmem_budget_bytes=8 * 2**20,   # conservative for v7x's
                                                     # 32 MiB scoped default;
                                                     # raise (with
                                                     # vmem_limit_bytes) on
                                                     # v5e/v6e if desired.
                force_hbm_gather=False):
    """Full NCF forward pass with the embedding gather fused into the kernel."""
    u_tab = params["u_emb"]                   # [n_users, D]
    i_tab = params["i_emb"]                   # [n_items, D]
    mlp_w, mlp_b = params["mlp_w"], params["mlp_b"]
    out_w, out_b = params["out_w"], params["out_b"]
    n_hidden_layers = len(mlp_w)
    assert n_hidden_layers > 0

    D = u_tab.shape[1]
    assert i_tab.shape[1] == D
    B = u_ids.shape[0]

    # ---- batch tiling -----------------------------------------------------
    block_rows = _round_up(block_rows, 8)
    TB = min(block_rows, _round_up(B, 8))
    num_tiles = pl.cdiv(B, TB)
    # v7x has 2 TensorCores and the (resident-path) grid axis is "parallel":
    # prefer >=2 balanced tiles once the batch is big enough to split.
    if num_tiles == 1 and B > 256:
        TB = _round_up(pl.cdiv(B, 2), 128)
        num_tiles = pl.cdiv(B, TB)
    if num_tiles > 1 and num_tiles % 2 == 1:
        num_tiles += 1                        # even tile count for megacore
    B_pad = num_tiles * TB

    # Pad ids (id 0 is always valid); padded rows are discarded on the host.
    u_ids_p = jnp.zeros((B_pad,), jnp.int32).at[:B].set(u_ids.astype(jnp.int32))
    i_ids_p = jnp.zeros((B_pad,), jnp.int32).at[:B].set(i_ids.astype(jnp.int32))

    # Weights in PyTorch layout [out, in]; biases / out_w as columns.
    weight_args = []
    for w, b in zip(mlp_w, mlp_b):
        weight_args.append(w)                 # (out_f, in_f)
        weight_args.append(b.reshape(-1, 1))  # (out_f, 1)
    weight_args.append(out_w.reshape(-1, 1))  # (F_last, 1)
    weight_args.append(out_b.reshape(1, 1))   # (1, 1)

    weight_specs = [pl.BlockSpec(a.shape, lambda t, u, i: (0, 0))
                    for a in weight_args]
    out_spec = pl.BlockSpec((1, 1, TB), lambda t, u, i: (t, 0, 0))
    out_shape = jax.ShapeDtypeStruct((num_tiles, 1, TB), jnp.float32)

    table_bytes = u_tab.size * u_tab.dtype.itemsize + i_tab.size * i_tab.dtype.itemsize
    resident = (not force_hbm_gather) and (table_bytes <= table_vmem_budget_bytes)

    if resident:
        kernel = make_resident_kernel(n_hidden_layers, TB)
        in_specs = [pl.BlockSpec(u_tab.shape, lambda t, u, i: (0, 0)),
                    pl.BlockSpec(i_tab.shape, lambda t, u, i: (0, 0))] + weight_specs
        scratch = [pltpu.VMEM((TB, D), u_tab.dtype),
                   pltpu.VMEM((TB, D), i_tab.dtype)]
        dim_sem = ("parallel",)
    else:
        kernel = make_hbm_gather_kernel(n_hidden_layers, TB, num_tiles)
        in_specs = [pl.BlockSpec(memory_space=pl.ANY),
                    pl.BlockSpec(memory_space=pl.ANY)] + weight_specs
        scratch = [pltpu.VMEM((2, TB, D), u_tab.dtype),
                   pltpu.VMEM((2, TB, D), i_tab.dtype),
                   pltpu.SemaphoreType.DMA((2, 2))]
        # "arbitrary": the double-buffered gather carries state across grid
        # steps; on v7x one could trade this for "parallel" + single-buffering
        # to engage both TensorCores on the DMA issue.
        dim_sem = ("arbitrary",)

    grid_spec = pltpu.PrefetchScalarGridSpec(
        num_scalar_prefetch=2,                # u_ids, i_ids -> SMEM
        grid=(num_tiles,),
        in_specs=in_specs,
        out_specs=out_spec,
        scratch_shapes=scratch,
    )

    out = pl.pallas_call(
        kernel,
        out_shape=out_shape,
        grid_spec=grid_spec,
        compiler_params=pltpu.CompilerParams(dimension_semantics=dim_sem),
    )(u_ids_p, i_ids_p, u_tab, i_tab, *weight_args)

    return out.reshape(-1)[:B]                # matches affine_transform.view(-1)


def ncf_reference(u_ids, i_ids, params):
    """Pure-JAX reference matching the PyTorch forward."""
    u_e = jnp.take(params["u_emb"], u_ids, axis=0).astype(jnp.float32)
    i_e = jnp.take(params["i_emb"], i_ids, axis=0).astype(jnp.float32)
    x = u_e * i_e
    for w, b in zip(params["mlp_w"], params["mlp_b"]):
        x = jnp.maximum(x @ w.T + b, 0.0)
    return (x @ params["out_w"].T + params["out_b"]).reshape(-1)


def init_params(key, n_users, n_items, n_latent_dims, n_hidden_layers):
    """Deterministic init mirroring NCF.init_weight()."""
    keys = jax.random.split(key, 3 + n_hidden_layers)
    params = {}
    params["u_emb"] = 0.01 * jax.random.normal(
        keys[0], (n_users, n_latent_dims), jnp.float32)
    params["i_emb"] = 0.01 * jax.random.normal(
        keys[1], (n_items, n_latent_dims), jnp.float32)

    mlp_w, mlp_b = [], []
    for l in range(n_hidden_layers):
        fin = n_latent_dims // (2 ** l)
        fout = n_latent_dims // (2 ** (l + 1))
        limit = (6.0 / (fin + fout)) ** 0.5               # xavier_uniform_
        w = jax.random.uniform(keys[2 + l], (fout, fin), jnp.float32, -limit, limit)
        mlp_w.append(w)
        mlp_b.append(jnp.zeros((fout,), jnp.float32))
    params["mlp_w"] = mlp_w
    params["mlp_b"] = mlp_b

    fin = n_latent_dims // (2 ** n_hidden_layers)
    limit = (6.0 / (fin + 1)) ** 0.5
    params["out_w"] = jax.random.uniform(keys[-1], (1, fin), jnp.float32, -limit, limit)
    params["out_b"] = jnp.zeros((1,), jnp.float32)
    return params


if __name__ == "__main__":
    structure = {
        "n_users": 10,
        "n_items": 12,
        "n_latent_dims": 32,
        "n_hidden_layers": 2,   # 32 -> 16 -> 8 -> 1
    }

    key = jax.random.PRNGKey(0)
    k_params, k_data = jax.random.split(key)
    params = init_params(k_params,
                         structure["n_users"], structure["n_items"],
                         structure["n_latent_dims"], structure["n_hidden_layers"])

    def run_case(name, batch, seed, **kwargs):
        ku, ki = jax.random.split(jax.random.fold_in(k_data, seed))
        u_ids = jax.random.randint(ku, (batch,), 0, structure["n_users"], dtype=jnp.int32)
        i_ids = jax.random.randint(ki, (batch,), 0, structure["n_items"], dtype=jnp.int32)
        out = jax.block_until_ready(ncf_forward(u_ids, i_ids, params, **kwargs))
        ref = ncf_reference(u_ids, i_ids, params)
        assert out.shape == (batch,), (name, out.shape)
        assert jnp.allclose(out, ref, atol=1e-5, rtol=1e-5), (name, out, ref)

    # 1) Resident-table fast path, single tile (the module's demo-sized case).
    run_case("resident_small", 8, 0)
    # 2) Resident-table fast path, multiple tiles (even tile count).
    run_case("resident_multitile", 300, 1, block_rows=128)
    # 3) HBM-gather path: per-row DMAs, aggregate waits, cross-step double
    #    buffering, ragged batch with padding.
    run_case("hbm_gather_double_buffered", 37, 2, block_rows=16,
             force_hbm_gather=True)

    print("KERNEL_OK")
</pallas_src>

<mosaic_0001>
module attributes {stable_mosaic.version = 11 : i64} {
  func.func @kernel(%arg0: i32, %arg1: memref<8xi32, #tpu.memory_space<smem>>, %arg2: memref<8xi32, #tpu.memory_space<smem>>, %arg3: memref<10x32xf32, #tpu.memory_space<vmem>>, %arg4: memref<12x32xf32, #tpu.memory_space<vmem>>, %arg5: memref<16x32xf32, #tpu.memory_space<vmem>>, %arg6: memref<16x1xf32, #tpu.memory_space<vmem>>, %arg7: memref<8x16xf32, #tpu.memory_space<vmem>>, %arg8: memref<8x1xf32, #tpu.memory_space<vmem>>, %arg9: memref<8x1xf32, #tpu.memory_space<vmem>>, %arg10: memref<1x1xf32, #tpu.memory_space<vmem>>, %arg11: memref<1x1x8xf32, #tpu.memory_space<vmem>>, %arg12: memref<8x32xf32, #tpu.memory_space<vmem>>, %arg13: memref<8x32xf32, #tpu.memory_space<vmem>>) attributes {dimension_semantics = [#tpu.dimension_semantics<parallel>], iteration_bounds = array<i64: 1>, scalar_prefetch = 2 : i64, scratch_operands = 2 : i64, tpu.core_type = #tpu.core_type<tc>, window_params = [{pipeline_mode = #tpu.pipeline_mode<synchronous>, transform_indices = @transform_0, window_bounds = array<i64: 10, 32>}, {pipeline_mode = #tpu.pipeline_mode<synchronous>, transform_indices = @transform_1, window_bounds = array<i64: 12, 32>}, {pipeline_mode = #tpu.pipeline_mode<synchronous>, transform_indices = @transform_2, window_bounds = array<i64: 16, 32>}, {pipeline_mode = #tpu.pipeline_mode<synchronous>, transform_indices = @transform_3, window_bounds = array<i64: 16, 1>}, {pipeline_mode = #tpu.pipeline_mode<synchronous>, transform_indices = @transform_4, window_bounds = array<i64: 8, 16>}, {pipeline_mode = #tpu.pipeline_mode<synchronous>, transform_indices = @transform_5, window_bounds = array<i64: 8, 1>}, {pipeline_mode = #tpu.pipeline_mode<synchronous>, transform_indices = @transform_6, window_bounds = array<i64: 8, 1>}, {pipeline_mode = #tpu.pipeline_mode<synchronous>, transform_indices = @transform_7, window_bounds = array<i64: 1, 1>}, {transform_indices = @transform_8, window_bounds = array<i64: 1, 1, 8>}]} {
    %c8_i32 = arith.constant 8 : i32
    %0 = arith.muli %arg0, %c8_i32 : i32
    %c0_i32 = arith.constant 0 : i32
    %c1_i32 = arith.constant 1 : i32
    %1 = arith.muli %c0_i32, %c1_i32 : i32
    %c0_i32_0 = arith.constant 0 : i32
    %2 = arith.addi %c0_i32_0, %1 : i32
    %c8_i32_1 = arith.constant 8 : i32
    %3 = arith.muli %2, %c8_i32_1 : i32
    %c0_i32_2 = arith.constant 0 : i32
    %4 = arith.addi %3, %c0_i32_2 : i32
    %5 = arith.addi %0, %4 : i32
    %6 = arith.index_cast %5 : i32 to index
    %7 = memref.load %arg1[%6] : memref<8xi32, #tpu.memory_space<smem>>
    %8 = arith.addi %0, %4 : i32
    %9 = arith.index_cast %8 : i32 to index
    %10 = memref.load %arg2[%9] : memref<8xi32, #tpu.memory_space<smem>>
    %11 = arith.index_cast %7 : i32 to index
    %c0 = arith.constant 0 : index
    %12 = vector.load %arg3[%11, %c0] : memref<10x32xf32, #tpu.memory_space<vmem>>, vector<1x32xf32>
    %13 = arith.index_cast %4 : i32 to index
    %c0_3 = arith.constant 0 : index
    %14 = vector.load %arg12[%13, %c0_3] : memref<8x32xf32, #tpu.memory_space<vmem>>, vector<1x32xf32>
    tpu.vector_store %arg12[%13, %c0_3], %12 {strides = array<i32>} : memref<8x32xf32, #tpu.memory_space<vmem>>, vector<1x32xf32>,
    %15 = arith.index_cast %10 : i32 to index
    %c0_4 = arith.constant 0 : index
    %16 = vector.load %arg4[%15, %c0_4] : memref<12x32xf32, #tpu.memory_space<vmem>>, vector<1x32xf32>
    %17 = arith.index_cast %4 : i32 to index
    %c0_5 = arith.constant 0 : index
    %18 = vector.load %arg13[%17, %c0_5] : memref<8x32xf32, #tpu.memory_space<vmem>>, vector<1x32xf32>
    tpu.vector_store %arg13[%17, %c0_5], %16 {strides = array<i32>} : memref<8x32xf32, #tpu.memory_space<vmem>>, vector<1x32xf32>,
    %c8_i32_6 = arith.constant 8 : i32
    %19 = arith.muli %2, %c8_i32_6 : i32
    %c1_i32_7 = arith.constant 1 : i32
    %20 = arith.addi %19, %c1_i32_7 : i32
    %21 = arith.addi %0, %20 : i32
    %22 = arith.index_cast %21 : i32 to index
    %23 = memref.load %arg1[%22] : memref<8xi32, #tpu.memory_space<smem>>
    %24 = arith.addi %0, %20 : i32
    %25 = arith.index_cast %24 : i32 to index
    %26 = memref.load %arg2[%25] : memref<8xi32, #tpu.memory_space<smem>>
    %27 = arith.index_cast %23 : i32 to index
    %c0_8 = arith.constant 0 : index
    %28 = vector.load %arg3[%27, %c0_8] : memref<10x32xf32, #tpu.memory_space<vmem>>, vector<1x32xf32>
    %29 = arith.index_cast %20 : i32 to index
    %c0_9 = arith.constant 0 : index
    %30 = vector.load %arg12[%29, %c0_9] : memref<8x32xf32, #tpu.memory_space<vmem>>, vector<1x32xf32>
    tpu.vector_store %arg12[%29, %c0_9], %28 {strides = array<i32>} : memref<8x32xf32, #tpu.memory_space<vmem>>, vector<1x32xf32>,
    %31 = arith.index_cast %26 : i32 to index
    %c0_10 = arith.constant 0 : index
    %32 = vector.load %arg4[%31, %c0_10] : memref<12x32xf32, #tpu.memory_space<vmem>>, vector<1x32xf32>
    %33 = arith.index_cast %20 : i32 to index
    %c0_11 = arith.constant 0 : index
    %34 = vector.load %arg13[%33, %c0_11] : memref<8x32xf32, #tpu.memory_space<vmem>>, vector<1x32xf32>
    tpu.vector_store %arg13[%33, %c0_11], %32 {strides = array<i32>} : memref<8x32xf32, #tpu.memory_space<vmem>>, vector<1x32xf32>,
    %c8_i32_12 = arith.constant 8 : i32
    %35 = arith.muli %2, %c8_i32_12 : i32
    %c2_i32 = arith.constant 2 : i32
    %36 = arith.addi %35, %c2_i32 : i32
    %37 = arith.addi %0, %36 : i32
    %38 = arith.index_cast %37 : i32 to index
    %39 = memref.load %arg1[%38] : memref<8xi32, #tpu.memory_space<smem>>
    %40 = arith.addi %0, %36 : i32
    %41 = arith.index_cast %40 : i32 to index
    %42 = memref.load %arg2[%41] : memref<8xi32, #tpu.memory_space<smem>>
    %43 = arith.index_cast %39 : i32 to index
    %c0_13 = arith.constant 0 : index
    %44 = vector.load %arg3[%43, %c0_13] : memref<10x32xf32, #tpu.memory_space<vmem>>, vector<1x32xf32>
    %45 = arith.index_cast %36 : i32 to index
    %c0_14 = arith.constant 0 : index
    %46 = vector.load %arg12[%45, %c0_14] : memref<8x32xf32, #tpu.memory_space<vmem>>, vector<1x32xf32>
    tpu.vector_store %arg12[%45, %c0_14], %44 {strides = array<i32>} : memref<8x32xf32, #tpu.memory_space<vmem>>, vector<1x32xf32>,
    %47 = arith.index_cast %42 : i32 to index
    %c0_15 = arith.constant 0 : index
    %48 = vector.load %arg4[%47, %c0_15] : memref<12x32xf32, #tpu.memory_space<vmem>>, vector<1x32xf32>
    %49 = arith.index_cast %36 : i32 to index
    %c0_16 = arith.constant 0 : index
    %50 = vector.load %arg13[%49, %c0_16] : memref<8x32xf32, #tpu.memory_space<vmem>>, vector<1x32xf32>
    tpu.vector_store %arg13[%49, %c0_16], %48 {strides = array<i32>} : memref<8x32xf32, #tpu.memory_space<vmem>>, vector<1x32xf32>,
    %c8_i32_17 = arith.constant 8 : i32
    %51 = arith.muli %2, %c8_i32_17 : i32
    %c3_i32 = arith.constant 3 : i32
    %52 = arith.addi %51, %c3_i32 : i32
    %53 = arith.addi %0, %52 : i32
    %54 = arith.index_cast %53 : i32 to index
    %55 = memref.load %arg1[%54] : memref<8xi32, #tpu.memory_space<smem>>
    %56 = arith.addi %0, %52 : i32
    %57 = arith.index_cast %56 : i32 to index
    %58 = memref.load %arg2[%57] : memref<8xi32, #tpu.memory_space<smem>>
    %59 = arith.index_cast %55 : i32 to index
    %c0_18 = arith.constant 0 : index
    %60 = vector.load %arg3[%59, %c0_18] : memref<10x32xf32, #tpu.memory_space<vmem>>, vector<1x32xf32>
    %61 = arith.index_cast %52 : i32 to index
    %c0_19 = arith.constant 0 : index
    %62 = vector.load %arg12[%61, %c0_19] : memref<8x32xf32, #tpu.memory_space<vmem>>, vector<1x32xf32>
    tpu.vector_store %arg12[%61, %c0_19], %60 {strides = array<i32>} : memref<8x32xf32, #tpu.memory_space<vmem>>, vector<1x32xf32>,
    %63 = arith.index_cast %58 : i32 to index
    %c0_20 = arith.constant 0 : index
    %64 = vector.load %arg4[%63, %c0_20] : memref<12x32xf32, #tpu.memory_space<vmem>>, vector<1x32xf32>
    %65 = arith.index_cast %52 : i32 to index
    %c0_21 = arith.constant 0 : index
    %66 = vector.load %arg13[%65, %c0_21] : memref<8x32xf32, #tpu.memory_space<vmem>>, vector<1x32xf32>
    tpu.vector_store %arg13[%65, %c0_21], %64 {strides = array<i32>} : memref<8x32xf32, #tpu.memory_space<vmem>>, vector<1x32xf32>,
    %c8_i32_22 = arith.constant 8 : i32
    %67 = arith.muli %2, %c8_i32_22 : i32
    %c4_i32 = arith.constant 4 : i32
    %68 = arith.addi %67, %c4_i32 : i32
    %69 = arith.addi %0, %68 : i32
    %70 = arith.index_cast %69 : i32 to index
    %71 = memref.load %arg1[%70] : memref<8xi32, #tpu.memory_space<smem>>
    %72 = arith.addi %0, %68 : i32
    %73 = arith.index_cast %72 : i32 to index
    %74 = memref.load %arg2[%73] : memref<8xi32, #tpu.memory_space<smem>>
    %75 = arith.index_cast %71 : i32 to index
    %c0_23 = arith.constant 0 : index
    %76 = vector.load %arg3[%75, %c0_23] : memref<10x32xf32, #tpu.memory_space<vmem>>, vector<1x32xf32>
    %77 = arith.index_cast %68 : i32 to index
    %c0_24 = arith.constant 0 : index
    %78 = vector.load %arg12[%77, %c0_24] : memref<8x32xf32, #tpu.memory_space<vmem>>, vector<1x32xf32>
    tpu.vector_store %arg12[%77, %c0_24], %76 {strides = array<i32>} : memref<8x32xf32, #tpu.memory_space<vmem>>, vector<1x32xf32>,
    %79 = arith.index_cast %74 : i32 to index
    %c0_25 = arith.constant 0 : index
    %80 = vector.load %arg4[%79, %c0_25] : memref<12x32xf32, #tpu.memory_space<vmem>>, vector<1x32xf32>
    %81 = arith.index_cast %68 : i32 to index
    %c0_26 = arith.constant 0 : index
    %82 = vector.load %arg13[%81, %c0_26] : memref<8x32xf32, #tpu.memory_space<vmem>>, vector<1x32xf32>
    tpu.vector_store %arg13[%81, %c0_26], %80 {strides = array<i32>} : memref<8x32xf32, #tpu.memory_space<vmem>>, vector<1x32xf32>,
    %c8_i32_27 = arith.constant 8 : i32
    %83 = arith.muli %2, %c8_i32_27 : i32
    %c5_i32 = arith.constant 5 : i32
    %84 = arith.addi %83, %c5_i32 : i32
    %85 = arith.addi %0, %84 : i32
    %86 = arith.index_cast %85 : i32 to index
    %87 = memref.load %arg1[%86] : memref<8xi32, #tpu.memory_space<smem>>
    %88 = arith.addi %0, %84 : i32
    %89 = arith.index_cast %88 : i32 to index
    %90 = memref.load %arg2[%89] : memref<8xi32, #tpu.memory_space<smem>>
    %91 = arith.index_cast %87 : i32 to index
    %c0_28 = arith.constant 0 : index
    %92 = vector.load %arg3[%91, %c0_28] : memref<10x32xf32, #tpu.memory_space<vmem>>, vector<1x32xf32>
    %93 = arith.index_cast %84 : i32 to index
    %c0_29 = arith.constant 0 : index
    %94 = vector.load %arg12[%93, %c0_29] : memref<8x32xf32, #tpu.memory_space<vmem>>, vector<1x32xf32>
    tpu.vector_store %arg12[%93, %c0_29], %92 {strides = array<i32>} : memref<8x32xf32, #tpu.memory_space<vmem>>, vector<1x32xf32>,
    %95 = arith.index_cast %90 : i32 to index
    %c0_30 = arith.constant 0 : index
    %96 = vector.load %arg4[%95, %c0_30] : memref<12x32xf32, #tpu.memory_space<vmem>>, vector<1x32xf32>
    %97 = arith.index_cast %84 : i32 to index
    %c0_31 = arith.constant 0 : index
    %98 = vector.load %arg13[%97, %c0_31] : memref<8x32xf32, #tpu.memory_space<vmem>>, vector<1x32xf32>
    tpu.vector_store %arg13[%97, %c0_31], %96 {strides = array<i32>} : memref<8x32xf32, #tpu.memory_space<vmem>>, vector<1x32xf32>,
    %c8_i32_32 = arith.constant 8 : i32
    %99 = arith.muli %2, %c8_i32_32 : i32
    %c6_i32 = arith.constant 6 : i32
    %100 = arith.addi %99, %c6_i32 : i32
    %101 = arith.addi %0, %100 : i32
    %102 = arith.index_cast %101 : i32 to index
    %103 = memref.load %arg1[%102] : memref<8xi32, #tpu.memory_space<smem>>
    %104 = arith.addi %0, %100 : i32
    %105 = arith.index_cast %104 : i32 to index
    %106 = memref.load %arg2[%105] : memref<8xi32, #tpu.memory_space<smem>>
    %107 = arith.index_cast %103 : i32 to index
    %c0_33 = arith.constant 0 : index
    %108 = vector.load %arg3[%107, %c0_33] : memref<10x32xf32, #tpu.memory_space<vmem>>, vector<1x32xf32>
    %109 = arith.index_cast %100 : i32 to index
    %c0_34 = arith.constant 0 : index
    %110 = vector.load %arg12[%109, %c0_34] : memref<8x32xf32, #tpu.memory_space<vmem>>, vector<1x32xf32>
    tpu.vector_store %arg12[%109, %c0_34], %108 {strides = array<i32>} : memref<8x32xf32, #tpu.memory_space<vmem>>, vector<1x32xf32>,
    %111 = arith.index_cast %106 : i32 to index
    %c0_35 = arith.constant 0 : index
    %112 = vector.load %arg4[%111, %c0_35] : memref<12x32xf32, #tpu.memory_space<vmem>>, vector<1x32xf32>
    %113 = arith.index_cast %100 : i32 to index
    %c0_36 = arith.constant 0 : index
    %114 = vector.load %arg13[%113, %c0_36] : memref<8x32xf32, #tpu.memory_space<vmem>>, vector<1x32xf32>
    tpu.vector_store %arg13[%113, %c0_36], %112 {strides = array<i32>} : memref<8x32xf32, #tpu.memory_space<vmem>>, vector<1x32xf32>,
    %c8_i32_37 = arith.constant 8 : i32
    %115 = arith.muli %2, %c8_i32_37 : i32
    %c7_i32 = arith.constant 7 : i32
    %116 = arith.addi %115, %c7_i32 : i32
    %117 = arith.addi %0, %116 : i32
    %118 = arith.index_cast %117 : i32 to index
    %119 = memref.load %arg1[%118] : memref<8xi32, #tpu.memory_space<smem>>
    %120 = arith.addi %0, %116 : i32
    %121 = arith.index_cast %120 : i32 to index
    %122 = memref.load %arg2[%121] : memref<8xi32, #tpu.memory_space<smem>>
    %123 = arith.index_cast %119 : i32 to index
    %c0_38 = arith.constant 0 : index
    %124 = vector.load %arg3[%123, %c0_38] : memref<10x32xf32, #tpu.memory_space<vmem>>, vector<1x32xf32>
    %125 = arith.index_cast %116 : i32 to index
    %c0_39 = arith.constant 0 : index
    %126 = vector.load %arg12[%125, %c0_39] : memref<8x32xf32, #tpu.memory_space<vmem>>, vector<1x32xf32>
    tpu.vector_store %arg12[%125, %c0_39], %124 {strides = array<i32>} : memref<8x32xf32, #tpu.memory_space<vmem>>, vector<1x32xf32>,
    %127 = arith.index_cast %122 : i32 to index
    %c0_40 = arith.constant 0 : index
    %128 = vector.load %arg4[%127, %c0_40] : memref<12x32xf32, #tpu.memory_space<vmem>>, vector<1x32xf32>
    %129 = arith.index_cast %116 : i32 to index
    %c0_41 = arith.constant 0 : index
    %130 = vector.load %arg13[%129, %c0_41] : memref<8x32xf32, #tpu.memory_space<vmem>>, vector<1x32xf32>
    tpu.vector_store %arg13[%129, %c0_41], %128 {strides = array<i32>} : memref<8x32xf32, #tpu.memory_space<vmem>>, vector<1x32xf32>,
    %c1_i32_42 = arith.constant 1 : i32
    %c0_43 = arith.constant 0 : index
    %c0_44 = arith.constant 0 : index
    %131 = vector.load %arg12[%c0_43, %c0_44] : memref<8x32xf32, #tpu.memory_space<vmem>>, vector<8x32xf32>
    %c0_45 = arith.constant 0 : index
    %c0_46 = arith.constant 0 : index
    %132 = vector.load %arg13[%c0_45, %c0_46] : memref<8x32xf32, #tpu.memory_space<vmem>>, vector<8x32xf32>
    %133 = arith.mulf %131, %132 : vector<8x32xf32>
    %c0_47 = arith.constant 0 : index
    %c0_48 = arith.constant 0 : index
    %134 = vector.load %arg5[%c0_47, %c0_48] : memref<16x32xf32, #tpu.memory_space<vmem>>, vector<16x32xf32>
    %c0_49 = arith.constant 0 : index
    %c0_50 = arith.constant 0 : index
    %135 = vector.load %arg6[%c0_49, %c0_50] : memref<16x1xf32, #tpu.memory_space<vmem>>, vector<16x1xf32>
    %cst = arith.constant dense<0.000000e+00> : vector<16x8xf32>
    %136 = tpu.matmul %134, %133, %cst {dimension_numbers = #tpu.dot_dimension_numbers<[1], [1], [0], [0], [0, 0, 1, 0], [], []>} : vector<16x32xf32>, vector<8x32xf32>, vector<16x8xf32> -> vector<16x8xf32>
    %137 = vector.broadcast %135 : vector<16x1xf32> to vector<16x8xf32>
    %138 = arith.addf %136, %137 : vector<16x8xf32>
    %cst_51 = arith.constant 0.000000e+00 : f32
    %139 = vector.broadcast %cst_51 : f32 to vector<16x8xf32>
    %140 = arith.maximumf %138, %139 : vector<16x8xf32>
    %c0_52 = arith.constant 0 : index
    %c0_53 = arith.constant 0 : index
    %141 = vector.load %arg7[%c0_52, %c0_53] : memref<8x16xf32, #tpu.memory_space<vmem>>, vector<8x16xf32>
    %c0_54 = arith.constant 0 : index
    %c0_55 = arith.constant 0 : index
    %142 = vector.load %arg8[%c0_54, %c0_55] : memref<8x1xf32, #tpu.memory_space<vmem>>, vector<8x1xf32>
    %cst_56 = arith.constant dense<0.000000e+00> : vector<8x8xf32>
    %143 = tpu.matmul %141, %140, %cst_56 {dimension_numbers = #tpu.dot_dimension_numbers<[1], [0], [0], [1], [0, 0, 1, 1], [], []>} : vector<8x16xf32>, vector<16x8xf32>, vector<8x8xf32> -> vector<8x8xf32>
    %144 = vector.broadcast %142 : vector<8x1xf32> to vector<8x8xf32>
    %145 = arith.addf %143, %144 : vector<8x8xf32>
    %cst_57 = arith.constant 0.000000e+00 : f32
    %146 = vector.broadcast %cst_57 : f32 to vector<8x8xf32>
    %147 = arith.maximumf %145, %146 : vector<8x8xf32>
    %c0_58 = arith.constant 0 : index
    %c0_59 = arith.constant 0 : index
    %148 = vector.load %arg9[%c0_58, %c0_59] : memref<8x1xf32, #tpu.memory_space<vmem>>, vector<8x1xf32>
    %c0_60 = arith.constant 0 : index
    %c0_61 = arith.constant 0 : index
    %149 = vector.load %arg10[%c0_60, %c0_61] : memref<1x1xf32, #tpu.memory_space<vmem>>, vector<1x1xf32>
    %150 = vector.broadcast %148 : vector<8x1xf32> to vector<8x8xf32>
    %151 = arith.mulf %147, %150 : vector<8x8xf32>
    %cst_62 = arith.constant dense<0.000000e+00> : vector<8xf32>
    %152 = vector.multi_reduction <add>, %151, %cst_62 [0] : vector<8x8xf32> to vector<8xf32>
    %153 = vector.shape_cast %152 : vector<8xf32> to vector<1x8xf32>
    %154 = vector.broadcast %149 : vector<1x1xf32> to vector<1x8xf32>
    %155 = arith.addf %153, %154 : vector<1x8xf32>
    %156 = vector.shape_cast %155 : vector<1x8xf32> to vector<1x1x8xf32>
    %c0_63 = arith.constant 0 : index
    %c0_64 = arith.constant 0 : index
    %c0_65 = arith.constant 0 : index
    %157 = vector.load %arg11[%c0_63, %c0_64, %c0_65] : memref<1x1x8xf32, #tpu.memory_space<vmem>>, vector<1x1x8xf32>
    tpu.vector_store %arg11[%c0_63, %c0_64, %c0_65], %156 {strides = array<i32>} : memref<1x1x8xf32, #tpu.memory_space<vmem>>, vector<1x1x8xf32>,
    return
  }
  func.func @transform_0(%arg0: i32, %arg1: memref<8xi32, #tpu.memory_space<smem>>, %arg2: memref<8xi32, #tpu.memory_space<smem>>) -> (i32, i32) {
    %c0_i32 = arith.constant 0 : i32
    %c0_i32_0 = arith.constant 0 : i32
    %c0_i32_1 = arith.constant 0 : i32
    return %c0_i32, %c0_i32_0 : i32, i32
  }
  func.func @transform_1(%arg0: i32, %arg1: memref<8xi32, #tpu.memory_space<smem>>, %arg2: memref<8xi32, #tpu.memory_space<smem>>) -> (i32, i32) {
    %c0_i32 = arith.constant 0 : i32
    %c0_i32_0 = arith.constant 0 : i32
    %c0_i32_1 = arith.constant 0 : i32
    return %c0_i32, %c0_i32_0 : i32, i32
  }
  func.func @transform_2(%arg0: i32, %arg1: memref<8xi32, #tpu.memory_space<smem>>, %arg2: memref<8xi32, #tpu.memory_space<smem>>) -> (i32, i32) {
    %c0_i32 = arith.constant 0 : i32
    %c0_i32_0 = arith.constant 0 : i32
    %c0_i32_1 = arith.constant 0 : i32
    return %c0_i32, %c0_i32_0 : i32, i32
  }
  func.func @transform_3(%arg0: i32, %arg1: memref<8xi32, #tpu.memory_space<smem>>, %arg2: memref<8xi32, #tpu.memory_space<smem>>) -> (i32, i32) {
    %c0_i32 = arith.constant 0 : i32
    %c0_i32_0 = arith.constant 0 : i32
    %c0_i32_1 = arith.constant 0 : i32
    return %c0_i32, %c0_i32_0 : i32, i32
  }
  func.func @transform_4(%arg0: i32, %arg1: memref<8xi32, #tpu.memory_space<smem>>, %arg2: memref<8xi32, #tpu.memory_space<smem>>) -> (i32, i32) {
    %c0_i32 = arith.constant 0 : i32
    %c0_i32_0 = arith.constant 0 : i32
    %c0_i32_1 = arith.constant 0 : i32
    return %c0_i32, %c0_i32_0 : i32, i32
  }
  func.func @transform_5(%arg0: i32, %arg1: memref<8xi32, #tpu.memory_space<smem>>, %arg2: memref<8xi32, #tpu.memory_space<smem>>) -> (i32, i32) {
    %c0_i32 = arith.constant 0 : i32
    %c0_i32_0 = arith.constant 0 : i32
    %c0_i32_1 = arith.constant 0 : i32
    return %c0_i32, %c0_i32_0 : i32, i32
  }
  func.func @transform_6(%arg0: i32, %arg1: memref<8xi32, #tpu.memory_space<smem>>, %arg2: memref<8xi32, #tpu.memory_space<smem>>) -> (i32, i32) {
    %c0_i32 = arith.constant 0 : i32
    %c0_i32_0 = arith.constant 0 : i32
    %c0_i32_1 = arith.constant 0 : i32
    return %c0_i32, %c0_i32_0 : i32, i32
  }
  func.func @transform_7(%arg0: i32, %arg1: memref<8xi32, #tpu.memory_space<smem>>, %arg2: memref<8xi32, #tpu.memory_space<smem>>) -> (i32, i32) {
    %c0_i32 = arith.constant 0 : i32
    %c0_i32_0 = arith.constant 0 : i32
    %c0_i32_1 = arith.constant 0 : i32
    return %c0_i32, %c0_i32_0 : i32, i32
  }
  func.func @transform_8(%arg0: i32, %arg1: memref<8xi32, #tpu.memory_space<smem>>, %arg2: memref<8xi32, #tpu.memory_space<smem>>) -> (i32, i32, i32) {
    %c0_i32 = arith.constant 0 : i32
    %c0_i32_0 = arith.constant 0 : i32
    %c0_i32_1 = arith.constant 0 : i32
    return %arg0, %c0_i32, %c0_i32_0 : i32, i32, i32
  }
}

</mosaic_0001>

<llo_original>
// kernel: tpu_custom_call.1
$region0: #{tpu_custom_call.1}
  #allocation0 [shape = 'u32[]', space=smem, size = 0x4, offset = 0x4, fixed_abs, tag = 'smem constant byte address 0x4 - core index']
  #allocation1 [shape = 'u32[72,128]{1,0:T(1,128)}', space=vmem, size = 0x9000, scoped, tag = 'internal scratch']
  #allocation2 [shape = 'f32[8,32]{1,0:T(8,128)}', space=vmem, size = 0x1000, scoped, tag = 'scratch operand']
  #allocation3 [shape = 'f32[8,32]{1,0:T(8,128)}', space=vmem, size = 0x1000, scoped, tag = 'scratch operand']
  #allocation4 [shape = 's32[1]{0}', space=sflag, size = 0x4, scoped, tag = 'scoped memory for tpu_custom_call.1']
  #allocation5 [shape = 'u8[512]{0}', space=smem, size = 0x200, scoped, tag = 'prefetched SMEM operand 0']
  #allocation6 [shape = 'u8[512]{0}', space=smem, size = 0x200, scoped, tag = 'prefetched SMEM operand 1']
  #allocation7 [shape = 'f32[1,1]{1,0:T(1,128)S(1)}', space=vmem, size = 0x200, scoped, tag = 'scoped memory for tpu_custom_call.1']
  %s0 = inlined_call_operand.vmem [shape: s32[8], index: 0, kind: input, shape index: {}]
  %s1 = inlined_call_operand.vmem [shape: s32[8], index: 1, kind: input, shape index: {}]
  %s2 = inlined_call_operand.vmem [shape: f32[10,32], index: 2, kind: input, shape index: {}]
  %s3 = inlined_call_operand.vmem [shape: f32[12,32], index: 3, kind: input, shape index: {}]
  %s4 = inlined_call_operand.hbm [shape: f32[16,32], index: 4, kind: input, shape index: {}]
  %s5 = inlined_call_operand.vmem [shape: f32[16,1], index: 5, kind: input, shape index: {}]
  %s6 = inlined_call_operand.hbm [shape: f32[8,16], index: 6, kind: input, shape index: {}]
  %s7 = inlined_call_operand.vmem [shape: f32[8,1], index: 7, kind: input, shape index: {}]
  %s8 = inlined_call_operand.vmem [shape: f32[8,1], index: 8, kind: input, shape index: {}]
  %s9 = inlined_call_operand.<no memory space> [shape: f32[1,1], index: 9, kind: input, shape index: {}]
  %s10 = inlined_call_operand.hbm [shape: f32[1,1,8], index: 10, kind: output, shape index: {}]
  %s11 = sld [smem:[#allocation0]]
  $region50: #{tpu_custom_call.1} parent=0
    _
  %s13 = ssub.s32 1, %s11
  %s14 = scalar_select 0, %s13, %s11
  %s16 = sshll.u32 %s0, 4
  %s17 = int_to_ptr.vmem [resolvable:$true] %s16
  %19 = dma.vmem_to_smem %s17, 16, [#allocation5], [#allocation4]
  %s21 = sshll.u32 %s1, 4
  %s22 = int_to_ptr.vmem [resolvable:$true] %s21
  %24 = dma.vmem_to_smem %s22, 16, [#allocation6], [#allocation4]
  %v25 = vstv %s9
  %26 = vst [vmem:[#allocation7] sm:$0x1] %v25
  %28 = dma.done [#allocation4], 32
  %29 = sfence
  $region1: #{tpu_custom_call.1} parent=0
    #allocation8 [shape = 'u8[8192]{0}', space=vmem, size = 0x2000, scoped, tag = 'input window, operand 4, single buffered']
    #allocation9 [shape = 's32[1]{0}', space=sflag, size = 0x4, scoped, tag = 'scoped memory for tpu_custom_call.1']
    #allocation10 [shape = 's32[1]{0}', space=sflag, size = 0x4, scoped, tag = 'scoped memory for tpu_custom_call.1']
    #allocation11 [shape = 'u8[4096]{0}', space=vmem, size = 0x1000, scoped, tag = 'input window, operand 6, single buffered']
    #allocation12 [shape = 's32[1]{0}', space=sflag, size = 0x4, scoped, tag = 'scoped memory for tpu_custom_call.1']
    #allocation13 [shape = 'u8[512]{0}', space=vmem, size = 0x400, scoped, tag = 'output window, operand 0, single buffered']
    %30 = vsyncpa [#allocation9], 0
    %31 = vsyncpa [#allocation12], 0
    %32 = vsyncpa [#allocation10], 0
    // Predicated region
    $region2: #{tpu_custom_call.1} parent=1 // pred_check
      _
    $region3: #{tpu_custom_call.1} parent=1 // pred_check_branch
      %34 = sbr.rel (0) target = $region5
    $region4: #{tpu_custom_call.1} parent=1 // pred_region
      _
    $region5: #{tpu_custom_call.1} parent=1 // pred_fallthru
      _
    // Predicated region
    $region6: #{tpu_custom_call.1} parent=1 // pred_check
      _
    $region7: #{tpu_custom_call.1} parent=1 // pred_check_branch
      %36 = sbr.rel (0) target = $region9
    $region8: #{tpu_custom_call.1} parent=1 // pred_region
      _
    $region9: #{tpu_custom_call.1} parent=1 // pred_fallthru
      _
    // Predicated region
    $region10: #{tpu_custom_call.1} parent=1 // pred_check
      _
    $region11: #{tpu_custom_call.1} parent=1 // pred_check_branch
      %38 = sbr.rel (0) target = $region13
    $region12: #{tpu_custom_call.1} parent=1 // pred_region
      %40 = vsyncadd [#allocation9], 0
      %s41 = sshll.u32 %s4, 4
      %s42 = int_to_ptr.hbm [resolvable:$true] %s41
      %s43 = sshll.u32 [#allocation8], 4
      %s44 = int_to_ptr.vmem [resolvable:$true] %s43
      %49 = dma.hbm_to_vmem [thread:$0]  %s42, 256, %s44, [#allocation9], 128, 128, 8
    $region13: #{tpu_custom_call.1} parent=1 // pred_fallthru
      _
    // Predicated region
    $region14: #{tpu_custom_call.1} parent=1 // pred_check
      _
    $region15: #{tpu_custom_call.1} parent=1 // pred_check_branch
      %51 = sbr.rel (0) target = $region17
    $region16: #{tpu_custom_call.1} parent=1 // pred_region
      _
    $region17: #{tpu_custom_call.1} parent=1 // pred_fallthru
      _
    // Predicated region
    $region18: #{tpu_custom_call.1} parent=1 // pred_check
      _
    $region19: #{tpu_custom_call.1} parent=1 // pred_check_branch
      %53 = sbr.rel (0) target = $region21
    $region20: #{tpu_custom_call.1} parent=1 // pred_region
      %55 = vsyncadd [#allocation12], 0
      %s57 = sshll.u32 %s6, 4
      %s58 = int_to_ptr.hbm [resolvable:$true] %s57
      %s59 = sshll.u32 [#allocation11], 4
      %s60 = int_to_ptr.vmem [resolvable:$true] %s59
      %62 = dma.hbm_to_vmem [thread:$0]  %s58, 128, %s60, [#allocation12]
    $region21: #{tpu_custom_call.1} parent=1 // pred_fallthru
      _
    // Predicated region
    $region22: #{tpu_custom_call.1} parent=1 // pred_check
      _
    $region23: #{tpu_custom_call.1} parent=1 // pred_check_branch
      %64 = sbr.rel (0) target = $region25
    $region24: #{tpu_custom_call.1} parent=1 // pred_region
      _
    $region25: #{tpu_custom_call.1} parent=1 // pred_fallthru
      _
    // Predicated region
    $region26: #{tpu_custom_call.1} parent=1 // pred_check
      _
    $region27: #{tpu_custom_call.1} parent=1 // pred_check_branch
      %66 = sbr.rel (0) target = $region29
    $region28: #{tpu_custom_call.1} parent=1 // pred_region
      _
    $region29: #{tpu_custom_call.1} parent=1 // pred_fallthru
      _
    // Predicated region
    $region30: #{tpu_custom_call.1} parent=1 // pred_check
      _
    $region31: #{tpu_custom_call.1} parent=1 // pred_check_branch
      %68 = sbr.rel (0) target = $region33
    $region32: #{tpu_custom_call.1} parent=1 // pred_region
      _
    $region33: #{tpu_custom_call.1} parent=1 // pred_fallthru
      _
    // Predicated region
    $region34: #{tpu_custom_call.1} parent=1 // pred_check
      _
    $region35: #{tpu_custom_call.1} parent=1 // pred_check_branch
      %70 = sbr.rel (0) target = $region37
    $region36: #{tpu_custom_call.1} parent=1 // pred_region
      %72 = dma.done [#allocation9], 256
    $region37: #{tpu_custom_call.1} parent=1 // pred_fallthru
      _
    // Predicated region
    $region38: #{tpu_custom_call.1} parent=1 // pred_check
      _
    $region39: #{tpu_custom_call.1} parent=1 // pred_check_branch
      %74 = sbr.rel (0) target = $region41
    $region40: #{tpu_custom_call.1} parent=1 // pred_region
      %76 = dma.done [#allocation12], 128
    $region41: #{tpu_custom_call.1} parent=1 // pred_fallthru
      _
    %s77 = smul.u32 0, 8
    %s78 = sld [smem:[#allocation5 + %s77]]
    %s79 = sld [smem:[#allocation6 + %s77]]
    %s80 = scalar_lea.vmem %s2, %s78
    %v81 = vld [vmem:[%s80] sm:$0x1]
    %vm82 = vcmask 253952
    %83 = vst.msk [vmem:[#allocation2] sm:$0x1] %vm82, %v81
    %s84 = scalar_lea.vmem %s3, %s79
    %v85 = vld [vmem:[%s84] sm:$0x1]
    %86 = vst.msk [vmem:[#allocation3] sm:$0x1] %vm82, %v85
    %s87 = sadd.s32 %s77, 1
    %s88 = sld [smem:[#allocation5 + %s87]]
    %s89 = sld [smem:[#allocation6 + %s87]]
    %s90 = scalar_lea.vmem %s2, %s88
    %v91 = vld [vmem:[%s90] sm:$0x1]
    %92 = vst.msk [vmem:[#allocation2 + $0x1] sm:$0x1] %vm82, %v91
    %s93 = scalar_lea.vmem %s3, %s89
    %v94 = vld [vmem:[%s93] sm:$0x1]
    %95 = vst.msk [vmem:[#allocation3 + $0x1] sm:$0x1] %vm82, %v94
    %s96 = sadd.s32 %s77, 2
    %s97 = sld [smem:[#allocation5 + %s96]]
    %s98 = sld [smem:[#allocation6 + %s96]]
    %s99 = scalar_lea.vmem %s2, %s97
    %v100 = vld [vmem:[%s99] sm:$0x1]
    %101 = vst.msk [vmem:[#allocation2 + $0x2] sm:$0x1] %vm82, %v100
    %s102 = scalar_lea.vmem %s3, %s98
    %v103 = vld [vmem:[%s102] sm:$0x1]
    %104 = vst.msk [vmem:[#allocation3 + $0x2] sm:$0x1] %vm82, %v103
    %s105 = sadd.s32 %s77, 3
    %s106 = sld [smem:[#allocation5 + %s105]]
    %s107 = sld [smem:[#allocation6 + %s105]]
    %s108 = scalar_lea.vmem %s2, %s106
    %v109 = vld [vmem:[%s108] sm:$0x1]
    %110 = vst.msk [vmem:[#allocation2 + $0x3] sm:$0x1] %vm82, %v109
    %s111 = scalar_lea.vmem %s3, %s107
    %v112 = vld [vmem:[%s111] sm:$0x1]
    %113 = vst.msk [vmem:[#allocation3 + $0x3] sm:$0x1] %vm82, %v112
    %s114 = sadd.s32 %s77, 4
    %s115 = sld [smem:[#allocation5 + %s114]]
    %s116 = sld [smem:[#allocation6 + %s114]]
    %s117 = scalar_lea.vmem %s2, %s115
    %v118 = vld [vmem:[%s117] sm:$0x1]
    %119 = vst.msk [vmem:[#allocation2 + $0x4] sm:$0x1] %vm82, %v118
    %s120 = scalar_lea.vmem %s3, %s116
    %v121 = vld [vmem:[%s120] sm:$0x1]
    %122 = vst.msk [vmem:[#allocation3 + $0x4] sm:$0x1] %vm82, %v121
    %s123 = sadd.s32 %s77, 5
    %s124 = sld [smem:[#allocation5 + %s123]]
    %s125 = sld [smem:[#allocation6 + %s123]]
    %s126 = scalar_lea.vmem %s2, %s124
    %v127 = vld [vmem:[%s126] sm:$0x1]
    %128 = vst.msk [vmem:[#allocation2 + $0x5] sm:$0x1] %vm82, %v127
    %s129 = scalar_lea.vmem %s3, %s125
    %v130 = vld [vmem:[%s129] sm:$0x1]
    %131 = vst.msk [vmem:[#allocation3 + $0x5] sm:$0x1] %vm82, %v130
    %s132 = sadd.s32 %s77, 6
    %s133 = sld [smem:[#allocation5 + %s132]]
    %s134 = sld [smem:[#allocation6 + %s132]]
    %s135 = scalar_lea.vmem %s2, %s133
    %v136 = vld [vmem:[%s135] sm:$0x1]
    %137 = vst.msk [vmem:[#allocation2 + $0x6] sm:$0x1] %vm82, %v136
    %s138 = scalar_lea.vmem %s3, %s134
    %v139 = vld [vmem:[%s138] sm:$0x1]
    %140 = vst.msk [vmem:[#allocation3 + $0x6] sm:$0x1] %vm82, %v139
    %s141 = sadd.s32 %s77, 7
    %s142 = sld [smem:[#allocation5 + %s141]]
    %s143 = sld [smem:[#allocation6 + %s141]]
    %s144 = scalar_lea.vmem %s2, %s142
    %v145 = vld [vmem:[%s144] sm:$0x1]
    %146 = vst.msk [vmem:[#allocation2 + $0x7] sm:$0x1] %vm82, %v145
    %s147 = scalar_lea.vmem %s3, %s143
    %v148 = vld [vmem:[%s147] sm:$0x1]
    %149 = vst.msk [vmem:[#allocation3 + $0x7] sm:$0x1] %vm82, %v148
    %v150 = vld [vmem:[#allocation2] sm:$0xff]
    %v151 = vld [vmem:[#allocation3] sm:$0xff]
    %v152 = vmul.f32 %v150, %v151
    %v153 = vld [vmem:[#allocation8] sm:$0xff]
    %v154 = vld [vmem:[#allocation8 + $0x8] sm:$0xff]
    %v155 = vld [vmem:[%s5] sm:$0xff]
    %v156 = vld [vmem:[%s5 + $0x8] sm:$0xff]
    %158 = vset.pattern.permute.xlu0 0
    %159 = vperm.xlu0 %158, %v155
    %v160 = vpop.permute.xlu0 %159
    %163 = vset.pattern.permute.xlu0 0
    %164 = vperm.xlu0 %163, %v156
    %v165 = vpop.permute.xlu0 %164
    %vm167 = vcmask 261120
    %v169 = vsel %vm167, %v153, 0
    %v172 = vsel %vm167, %v154, 0
    %v175 = vsel %vm167, %v152, 0
    %177 = vmatpush.xpose.msra.mxu0 0.0
    %178 = vmatpush.xpose.msra.mxu0 0.0
    %179 = vmatpush.xpose.msra.mxu0 0.0
    %180 = vmatpush.xpose.msra.mxu0 0.0
    %181 = vmatpush.xpose.msra.mxu0 0.0
    %182 = vmatpush.xpose.msra.mxu0 0.0
    %183 = vmatpush.xpose.msra.mxu0 0.0
    %184 = vmatpush.xpose.msra.mxu0 0.0
    %185 = vmatpush.xpose.msra.mxu0 0.0
    %186 = vmatpush.xpose.msra.mxu0 0.0
    %187 = vmatpush.xpose.msra.mxu0 0.0
    %188 = vmatpush.xpose.msra.mxu0 0.0
    %189 = vmatpush.xpose.msra.mxu0 0.0
    %190 = vmatpush.xpose.msra.mxu0 0.0
    %191 = vmatpush.xpose.msra.mxu0 0.0
    %192 = vmatpush.xpose.msra.mxu0 %v175
    %193 = vmatmul.f32.gmra.mxu0 %v169
    %v194 = vpop.f32.mrf.mxu0
    %v195 = vadd.f32 %v160, %v194
    %196 = vmatmul.f32.gmra.mxu0 %v172
    %v197 = vpop.f32.mrf.mxu0
    %v198 = vadd.f32 %v165, %v197
    %199 = vdwg.mxu0
    %v200 = vmax.f32 %v195, 0.0
    %v201 = vmax.f32 %v198, 0.0
    %v202 = vld [vmem:[#allocation11] sm:$0xff]
    %v203 = vld [vmem:[%s7] sm:$0xff]
    %205 = vset.pattern.permute.xlu0 0
    %206 = vperm.xlu0 %205, %v203
    %v207 = vpop.permute.xlu0 %206
    %vm209 = vcmask 130048
    %v211 = vsel %vm209, %v202, 0
    %213 = vmatpush.msra.mxu0 0.0
    %214 = vmatpush.msra.mxu0 0.0
    %215 = vmatpush.msra.mxu0 0.0
    %216 = vmatpush.msra.mxu0 0.0
    %217 = vmatpush.msra.mxu0 0.0
    %218 = vmatpush.msra.mxu0 0.0
    %219 = vmatpush.msra.mxu0 0.0
    %220 = vmatpush.msra.mxu0 0.0
    %221 = vmatpush.msra.mxu0 0.0
    %222 = vmatpush.msra.mxu0 0.0
    %223 = vmatpush.msra.mxu0 0.0
    %224 = vmatpush.msra.mxu0 0.0
    %225 = vmatpush.msra.mxu0 0.0
    %226 = vmatpush.msra.mxu0 0.0
    %227 = vmatpush.msra.mxu0 %v201
    %228 = vmatpush.msra.mxu0 %v200
    %229 = vmatmul.f32.gmra.mxu0 %v211
    %v230 = vpop.f32.mrf.mxu0
    %v231 = vadd.f32 %v207, %v230
    %232 = vdwg.mxu0
    %v233 = vmax.f32 %v231, 0.0
    %v234 = vld [vmem:[%s8] sm:$0xff]
    %v235 = vld [vmem:[#allocation7] sm:$0x1]
    %237 = vset.pattern.permute.xlu0 0
    %238 = vperm.xlu0 %237, %v234
    %v239 = vpop.permute.xlu0 %238
    %v241 = vmul.f32 %v233, %v239
    %vm242 = vcmask 64512
    %v243 = vsel %vm242, %v241, 0.0
    %v244 = vrot.slane %v243, 4
    %v245 = vadd.f32 %v243, %v244
    %v246 = vrot.slane %v245, 2
    %v247 = vadd.f32 %v245, %v246
    %v248 = vrot.slane %v247, 1
    %v249 = vadd.f32 %v247, %v248
    %251 = vset.pattern.permute.xlu0 0
    %252 = vperm.xlu0 %251, %v235
    %v253 = vpop.permute.xlu0 %252
    %v255 = vperm.slane %v253, 0
    %v256 = vadd.f32 %v249, %v255
    %vm257 = vcmask 57344
    %258 = vst.msk [vmem:[#allocation13] sm:$0x1] %vm257, %v256
    // Predicated region
    $region42: #{tpu_custom_call.1} parent=1 // pred_check
      _
    $region43: #{tpu_custom_call.1} parent=1 // pred_check_branch
      %260 = sbr.rel (0) target = $region45
    $region44: #{tpu_custom_call.1} parent=1 // pred_region
      %262 = vsyncadd [#allocation10], 0
      %s264 = sshll.u32 [#allocation13], 4
      %s265 = int_to_ptr.vmem [resolvable:$true] %s264
      %s266 = sshll.u32 %s10, 4
      %s267 = int_to_ptr.hbm [resolvable:$true] %s266
      %269 = dma.vmem_to_hbm [thread:$0]  %s265, 16, %s267, [#allocation10]
    $region45: #{tpu_custom_call.1} parent=1 // pred_fallthru
      _
    // Predicated region
    $region46: #{tpu_custom_call.1} parent=1 // pred_check
      _
    $region47: #{tpu_custom_call.1} parent=1 // pred_check_branch
      %271 = sbr.rel (0) target = $region49
    $region48: #{tpu_custom_call.1} parent=1 // pred_region
      %273 = dma.done [#allocation10], 16
    $region49: #{tpu_custom_call.1} parent=1 // pred_fallthru
      _
    %274 = vsyncpa [#allocation9], 1
    %275 = vsyncpa [#allocation12], 1
    %276 = vsyncpa [#allocation10], 1

</llo_original>
